<compile_context>
chip_gen: v7x
topology: tpu7x:2x2x1
jax: 0.10.0
libtpu: 0.0.40
codegen_flags: <defaults>
</compile_context>

<pallas_src>
import jax
import jax.numpy as jnp
from jax import lax
from jax.experimental import pallas as pl
from jax.experimental.pallas import tpu as pltpu


def _round_up(x, m):
    return ((x + m - 1) // m) * m


def _make_gauss_mlp_kernel(n_layers: int):
    """Fused kernel: MLP (matmul+relu chain) -> interleaved mu/std head."""

    def kernel(*refs):
        # refs: x, (W_0, b_0, ..., W_{L-1}, b_{L-1}), out
        x_ref = refs[0]
        wb_refs = refs[1:1 + 2 * n_layers]
        out_ref = refs[1 + 2 * n_layers]

        x = x_ref[...]                                    # (tb, state_dim) fp32
        for l in range(n_layers):
            w = wb_refs[2 * l][...]
            b = wb_refs[2 * l + 1][...]
            # bf16 operands (if prepped that way) with fp32 MXU accumulation;
            # fp32 bias add keeps the running activation in fp32.
            x = jnp.dot(x.astype(w.dtype), w,
                        preferred_element_type=jnp.float32) + b
            if l < n_layers - 1:
                x = jnp.maximum(x, 0.0)                   # ReLU on hidden layers

        # Columns of x are interleaved [mu0, ls0, mu1, ls1, ...] (weight-column
        # permutation done once at prep time), so the head is pure per-lane
        # VPU/EUP work followed by a per-lane select -- no XLU shuffles.
        mu_branch = jnp.abs(x)                            # relu(abs(mu)) == abs(mu)
        sigma_branch = 5.0 + 0.5 * (200.0 - 5.0) * (jnp.tanh(x) + 1.0)
        lane = lax.broadcasted_iota(jnp.int32, x.shape, 1)
        out_ref[...] = jnp.where((lane & 1) == 0, mu_branch, sigma_branch)

    return kernel


def prepare_gauss_mlp_params(params, mean15, std15, state_dim, action_dim,
                             matmul_dtype=jnp.float32):
    """One-time param prep: fold normalization into layer 0 and interleave the
    head columns of the last layer. Returns a flat [W0, b0, W1, b1, ...] list.

    params: list of (W, b), W: (in, out), b: (out,) or (1, out).
    mean15/std15: per-chunk scalars, shape (15,).
    matmul_dtype: jnp.bfloat16 recommended for large-batch v6e/v7x runs.
    """
    assert state_dim % 15 == 0, "norm() chunks the state into 15 pieces"
    chunk = state_dim // 15
    mean_full = jnp.repeat(jnp.asarray(mean15, jnp.float32), chunk)        # (S,)
    inv_std_full = 1.0 / jnp.repeat(jnp.asarray(std15, jnp.float32), chunk)

    n_layers = len(params)
    # dest column 2*a <- mu column a ; dest column 2*a+1 <- log_std column a
    perm = jnp.stack([jnp.arange(action_dim),
                      jnp.arange(action_dim) + action_dim], axis=1).reshape(-1)

    flat = []
    for l, (w, b) in enumerate(params):
        w = jnp.asarray(w, jnp.float32)
        b = jnp.asarray(b, jnp.float32).reshape(1, -1)
        if l == 0:
            # (s - mean)*inv_std @ W + b
            #   == s @ (inv_std[:,None]*W) + (b - (mean*inv_std) @ W)
            b = b - (mean_full * inv_std_full)[None, :] @ w
            w = inv_std_full[:, None] * w
        if l == n_layers - 1:
            w = w[:, perm]
            b = b[:, perm]
        flat.append(w.astype(matmul_dtype))
        flat.append(b)  # bias stays fp32 (added post-accumulation)
    return flat


def gauss_mlp_forward(s, h, c, flat_params, action_dim, *,
                      block_b=256, vmem_limit_bytes=32 * 1024 * 1024):
    """Runs the fused kernel. flat_params from prepare_gauss_mlp_params."""
    B, state_dim = s.shape
    n_layers = len(flat_params) // 2
    out_dim = 2 * action_dim

    # Batch tiling: rows in multiples of 8 (sublane); pad so the grid divides.
    B8 = _round_up(B, 8)
    tb = min(block_b, B8)
    B_pad = _round_up(B8, tb)

    s32 = s.astype(jnp.float32)
    if B_pad != B:
        s32 = jnp.pad(s32, ((0, B_pad - B), (0, 0)))

    in_specs = [pl.BlockSpec((tb, state_dim), lambda i: (i, 0))]
    for l in range(n_layers):
        w, b = flat_params[2 * l], flat_params[2 * l + 1]
        # Constant block index -> weights/biases stay VMEM-resident across
        # grid steps (no repeated HBM->VMEM DMA).
        in_specs.append(pl.BlockSpec(w.shape, lambda i: (0, 0)))
        in_specs.append(pl.BlockSpec(b.shape, lambda i: (0, 0)))
    out_spec = pl.BlockSpec((tb, out_dim), lambda i: (i, 0))

    kernel = _make_gauss_mlp_kernel(n_layers)
    out = pl.pallas_call(
        kernel,
        out_shape=jax.ShapeDtypeStruct((B_pad, out_dim), jnp.float32),
        grid=(B_pad // tb,),
        in_specs=in_specs,
        out_specs=out_spec,
        compiler_params=pltpu.CompilerParams(
            dimension_semantics=("parallel",),   # megacore split on v7x
            vmem_limit_bytes=vmem_limit_bytes),  # within v7x's 64 MiB VMEM
    )(s32, *flat_params)

    if B_pad != B:
        out = out[:B]
    # Free view: interleaved [mu0, std0, mu1, std1, ...] -> (B, action_dim, 2)
    output = out.reshape(B, action_dim, 2)
    return output, h, c


def init_mlp_params(key, state_dim, action_dim, width, depth):
    """Deterministic synthetic init for utils.MLP(state_dim -> 2*action_dim)."""
    dims = [state_dim] + [width] * depth + [2 * action_dim]
    params = []
    for i in range(len(dims) - 1):
        key, kw, kb = jax.random.split(key, 3)
        w = jax.random.normal(kw, (dims[i], dims[i + 1]), jnp.float32) / jnp.sqrt(
            jnp.float32(dims[i]))
        b = 0.01 * jax.random.normal(kb, (1, dims[i + 1]), jnp.float32)
        params.append((w, b))
    return params


def reference_forward(s, params, mean15, std15, action_dim):
    """Pure-JAX reference of the PyTorch forward (unfolded params)."""
    chunk = s.shape[1] // 15
    mean_full = jnp.repeat(mean15, chunk)[None, :]
    std_full = jnp.repeat(std15, chunk)[None, :]
    x = (s - mean_full) / std_full
    for l, (w, b) in enumerate(params):
        x = x @ w + b.reshape(1, -1)
        if l < len(params) - 1:
            x = jnp.maximum(x, 0.0)
    mu = jnp.abs(x[:, :action_dim])
    std = 5.0 + 0.5 * (200.0 - 5.0) * (jnp.tanh(x[:, action_dim:]) + 1.0)
    return jnp.concatenate([mu[:, :, None], std[:, :, None]], axis=2)


if __name__ == "__main__":
    key = jax.random.PRNGKey(0)

    # Small shapes consistent with the module (state_dim divisible by 15).
    B = 8
    state_dim = 30
    action_dim = 8
    width = 32
    depth = 2

    k_s, k_h, k_c, k_p = jax.random.split(key, 4)
    s = jax.random.normal(k_s, (B, state_dim), jnp.float32)
    h = jax.random.normal(k_h, (1, B, width), jnp.float32)   # pass-through hidden state
    c = jax.random.normal(k_c, (1, B, width), jnp.float32)   # pass-through cell state

    # Deterministic stand-in for 30new_guiyi_data.json mean/std (15 chunks).
    mean15 = 0.1 * jnp.arange(15, dtype=jnp.float32)
    std15 = 1.0 + 0.05 * jnp.arange(15, dtype=jnp.float32)

    params = init_mlp_params(k_p, state_dim, action_dim, width, depth)

    # One-time prep (fold norm into W0/b0, interleave head columns).
    # For large-batch production on v6e/v7x pass matmul_dtype=jnp.bfloat16.
    flat_params = prepare_gauss_mlp_params(params, mean15, std15,
                                           state_dim, action_dim,
                                           matmul_dtype=jnp.float32)

    output, h_out, c_out = gauss_mlp_forward(s, h, c, flat_params, action_dim)
    jax.block_until_ready((output, h_out, c_out))

    # Correctness gate vs pure-JAX reference of the original (unfolded) math.
    ref = reference_forward(s, params, mean15, std15, action_dim)
    max_err = float(jnp.max(jnp.abs(output - ref)))
    assert max_err < 1e-2, f"mismatch vs reference: max abs err {max_err}"

    assert output.shape == (B, action_dim, 2)
    assert h_out.shape == h.shape and c_out.shape == c.shape
    print("KERNEL_OK")
</pallas_src>

<mosaic_0001>
module attributes {stable_mosaic.version = 11 : i64} {
  func.func @kernel(%arg0: i32, %arg1: memref<8x30xf32, #tpu.memory_space<vmem>>, %arg2: memref<30x32xf32, #tpu.memory_space<vmem>>, %arg3: memref<1x32xf32, #tpu.memory_space<vmem>>, %arg4: memref<32x32xf32, #tpu.memory_space<vmem>>, %arg5: memref<1x32xf32, #tpu.memory_space<vmem>>, %arg6: memref<32x16xf32, #tpu.memory_space<vmem>>, %arg7: memref<1x16xf32, #tpu.memory_space<vmem>>, %arg8: memref<8x16xf32, #tpu.memory_space<vmem>>) attributes {dimension_semantics = [#tpu.dimension_semantics<parallel>], iteration_bounds = array<i64: 1>, scalar_prefetch = 0 : i64, scratch_operands = 0 : i64, tpu.core_type = #tpu.core_type<tc>, window_params = [{transform_indices = @transform_0, window_bounds = array<i64: 8, 30>}, {pipeline_mode = #tpu.pipeline_mode<synchronous>, transform_indices = @transform_1, window_bounds = array<i64: 30, 32>}, {pipeline_mode = #tpu.pipeline_mode<synchronous>, transform_indices = @transform_2, window_bounds = array<i64: 1, 32>}, {pipeline_mode = #tpu.pipeline_mode<synchronous>, transform_indices = @transform_3, window_bounds = array<i64: 32, 32>}, {pipeline_mode = #tpu.pipeline_mode<synchronous>, transform_indices = @transform_4, window_bounds = array<i64: 1, 32>}, {pipeline_mode = #tpu.pipeline_mode<synchronous>, transform_indices = @transform_5, window_bounds = array<i64: 32, 16>}, {pipeline_mode = #tpu.pipeline_mode<synchronous>, transform_indices = @transform_6, window_bounds = array<i64: 1, 16>}, {transform_indices = @transform_7, window_bounds = array<i64: 8, 16>}]} {
    %c0 = arith.constant 0 : index
    %c0_0 = arith.constant 0 : index
    %0 = vector.load %arg1[%c0, %c0_0] : memref<8x30xf32, #tpu.memory_space<vmem>>, vector<8x30xf32>
    %c0_1 = arith.constant 0 : index
    %c0_2 = arith.constant 0 : index
    %1 = vector.load %arg2[%c0_1, %c0_2] : memref<30x32xf32, #tpu.memory_space<vmem>>, vector<30x32xf32>
    %c0_3 = arith.constant 0 : index
    %c0_4 = arith.constant 0 : index
    %2 = vector.load %arg3[%c0_3, %c0_4] : memref<1x32xf32, #tpu.memory_space<vmem>>, vector<1x32xf32>
    %cst = arith.constant dense<0.000000e+00> : vector<8x32xf32>
    %3 = tpu.matmul %0, %1, %cst {dimension_numbers = #tpu.dot_dimension_numbers<[1], [0], [0], [1], [0, 0, 1, 1], [], []>} : vector<8x30xf32>, vector<30x32xf32>, vector<8x32xf32> -> vector<8x32xf32>
    %4 = vector.broadcast %2 : vector<1x32xf32> to vector<8x32xf32>
    %5 = arith.addf %3, %4 : vector<8x32xf32>
    %cst_5 = arith.constant 0.000000e+00 : f32
    %6 = vector.broadcast %cst_5 : f32 to vector<8x32xf32>
    %7 = arith.maximumf %5, %6 : vector<8x32xf32>
    %c0_6 = arith.constant 0 : index
    %c0_7 = arith.constant 0 : index
    %8 = vector.load %arg4[%c0_6, %c0_7] : memref<32x32xf32, #tpu.memory_space<vmem>>, vector<32x32xf32>
    %c0_8 = arith.constant 0 : index
    %c0_9 = arith.constant 0 : index
    %9 = vector.load %arg5[%c0_8, %c0_9] : memref<1x32xf32, #tpu.memory_space<vmem>>, vector<1x32xf32>
    %cst_10 = arith.constant dense<0.000000e+00> : vector<8x32xf32>
    %10 = tpu.matmul %7, %8, %cst_10 {dimension_numbers = #tpu.dot_dimension_numbers<[1], [0], [0], [1], [0, 0, 1, 1], [], []>} : vector<8x32xf32>, vector<32x32xf32>, vector<8x32xf32> -> vector<8x32xf32>
    %11 = vector.broadcast %9 : vector<1x32xf32> to vector<8x32xf32>
    %12 = arith.addf %10, %11 : vector<8x32xf32>
    %cst_11 = arith.constant 0.000000e+00 : f32
    %13 = vector.broadcast %cst_11 : f32 to vector<8x32xf32>
    %14 = arith.maximumf %12, %13 : vector<8x32xf32>
    %c0_12 = arith.constant 0 : index
    %c0_13 = arith.constant 0 : index
    %15 = vector.load %arg6[%c0_12, %c0_13] : memref<32x16xf32, #tpu.memory_space<vmem>>, vector<32x16xf32>
    %c0_14 = arith.constant 0 : index
    %c0_15 = arith.constant 0 : index
    %16 = vector.load %arg7[%c0_14, %c0_15] : memref<1x16xf32, #tpu.memory_space<vmem>>, vector<1x16xf32>
    %cst_16 = arith.constant dense<0.000000e+00> : vector<8x16xf32>
    %17 = tpu.matmul %14, %15, %cst_16 {dimension_numbers = #tpu.dot_dimension_numbers<[1], [0], [0], [1], [0, 0, 1, 1], [], []>} : vector<8x32xf32>, vector<32x16xf32>, vector<8x16xf32> -> vector<8x16xf32>
    %18 = vector.broadcast %16 : vector<1x16xf32> to vector<8x16xf32>
    %19 = arith.addf %17, %18 : vector<8x16xf32>
    %20 = math.absf %19 : vector<8x16xf32>
    %21 = math.tanh %19 : vector<8x16xf32>
    %cst_17 = arith.constant 1.000000e+00 : f32
    %22 = vector.broadcast %cst_17 : f32 to vector<8x16xf32>
    %23 = arith.addf %21, %22 : vector<8x16xf32>
    %cst_18 = arith.constant 9.750000e+01 : f32
    %24 = vector.broadcast %cst_18 : f32 to vector<8x16xf32>
    %25 = arith.mulf %24, %23 : vector<8x16xf32>
    %cst_19 = arith.constant 5.000000e+00 : f32
    %26 = vector.broadcast %cst_19 : f32 to vector<8x16xf32>
    %27 = arith.addf %26, %25 : vector<8x16xf32>
    %28 = tpu.iota {dimensions = array<i32: 1>} : vector<8x16xi32>
    %c1_i32 = arith.constant 1 : i32
    %29 = vector.broadcast %c1_i32 : i32 to vector<8x16xi32>
    %30 = arith.andi %28, %29 : vector<8x16xi32>
    %c0_i32 = arith.constant 0 : i32
    %31 = vector.broadcast %c0_i32 : i32 to vector<8x16xi32>
    %32 = arith.cmpi eq, %30, %31 : vector<8x16xi32>
    %33 = arith.select %32, %20, %27 : vector<8x16xi1>, vector<8x16xf32>
    %c0_20 = arith.constant 0 : index
    %c0_21 = arith.constant 0 : index
    %34 = vector.load %arg8[%c0_20, %c0_21] : memref<8x16xf32, #tpu.memory_space<vmem>>, vector<8x16xf32>
    tpu.vector_store %arg8[%c0_20, %c0_21], %33 {strides = array<i32>} : memref<8x16xf32, #tpu.memory_space<vmem>>, vector<8x16xf32>,
    return
  }
  func.func @transform_0(%arg0: i32) -> (i32, i32) {
    %c0_i32 = arith.constant 0 : i32
    %c0_i32_0 = arith.constant 0 : i32
    return %arg0, %c0_i32 : i32, i32
  }
  func.func @transform_1(%arg0: i32) -> (i32, i32) {
    %c0_i32 = arith.constant 0 : i32
    %c0_i32_0 = arith.constant 0 : i32
    %c0_i32_1 = arith.constant 0 : i32
    return %c0_i32, %c0_i32_0 : i32, i32
  }
  func.func @transform_2(%arg0: i32) -> (i32, i32) {
    %c0_i32 = arith.constant 0 : i32
    %c0_i32_0 = arith.constant 0 : i32
    %c0_i32_1 = arith.constant 0 : i32
    return %c0_i32, %c0_i32_0 : i32, i32
  }
  func.func @transform_3(%arg0: i32) -> (i32, i32) {
    %c0_i32 = arith.constant 0 : i32
    %c0_i32_0 = arith.constant 0 : i32
    %c0_i32_1 = arith.constant 0 : i32
    return %c0_i32, %c0_i32_0 : i32, i32
  }
  func.func @transform_4(%arg0: i32) -> (i32, i32) {
    %c0_i32 = arith.constant 0 : i32
    %c0_i32_0 = arith.constant 0 : i32
    %c0_i32_1 = arith.constant 0 : i32
    return %c0_i32, %c0_i32_0 : i32, i32
  }
  func.func @transform_5(%arg0: i32) -> (i32, i32) {
    %c0_i32 = arith.constant 0 : i32
    %c0_i32_0 = arith.constant 0 : i32
    %c0_i32_1 = arith.constant 0 : i32
    return %c0_i32, %c0_i32_0 : i32, i32
  }
  func.func @transform_6(%arg0: i32) -> (i32, i32) {
    %c0_i32 = arith.constant 0 : i32
    %c0_i32_0 = arith.constant 0 : i32
    %c0_i32_1 = arith.constant 0 : i32
    return %c0_i32, %c0_i32_0 : i32, i32
  }
  func.func @transform_7(%arg0: i32) -> (i32, i32) {
    %c0_i32 = arith.constant 0 : i32
    %c0_i32_0 = arith.constant 0 : i32
    return %arg0, %c0_i32 : i32, i32
  }
}

</mosaic_0001>

<llo_original>
// kernel: tpu_custom_call.1
$region0: #{tpu_custom_call.1}
  #allocation0 [shape = 'u32[]', space=smem, size = 0x4, offset = 0x4, fixed_abs, tag = 'smem constant byte address 0x4 - core index']
  #allocation1 [shape = 'u32[144,128]{1,0:T(1,128)}', space=vmem, size = 0x12000, scoped, tag = 'internal scratch']
  %s0 = inlined_call_operand.vmem [shape: f32[8,30], index: 0, kind: input, shape index: {}]
  %s1 = inlined_call_operand.vmem [shape: f32[30,32], index: 1, kind: input, shape index: {}]
  %s2 = inlined_call_operand.vmem [shape: f32[1,32], index: 2, kind: input, shape index: {}]
  %s3 = inlined_call_operand.hbm [shape: f32[32,32], index: 3, kind: input, shape index: {}]
  %s4 = inlined_call_operand.vmem [shape: f32[1,32], index: 4, kind: input, shape index: {}]
  %s5 = inlined_call_operand.vmem [shape: f32[32,16], index: 5, kind: input, shape index: {}]
  %s6 = inlined_call_operand.vmem [shape: f32[1,16], index: 6, kind: input, shape index: {}]
  %s7 = inlined_call_operand.hbm [shape: f32[8,16], index: 7, kind: output, shape index: {}]
  %s8 = sld [smem:[#allocation0]]
  $region42: #{tpu_custom_call.1} parent=0
    _
  %s10 = ssub.s32 1, %s8
  %s11 = scalar_select 0, %s10, %s8
  $region1: #{tpu_custom_call.1} parent=0
    #allocation2 [shape = 'u8[16384]{0}', space=vmem, size = 0x4000, scoped, tag = 'input window, operand 3, single buffered']
    #allocation3 [shape = 's32[1]{0}', space=sflag, size = 0x4, scoped, tag = 'scoped memory for tpu_custom_call.1']
    #allocation4 [shape = 's32[1]{0}', space=sflag, size = 0x4, scoped, tag = 'scoped memory for tpu_custom_call.1']
    #allocation5 [shape = 'u8[4096]{0}', space=vmem, size = 0x1000, scoped, tag = 'output window, operand 0, single buffered']
    %12 = vsyncpa [#allocation3], 0
    %13 = vsyncpa [#allocation4], 0
    // Predicated region
    $region2: #{tpu_custom_call.1} parent=1 // pred_check
      _
    $region3: #{tpu_custom_call.1} parent=1 // pred_check_branch
      %15 = sbr.rel (0) target = $region5
    $region4: #{tpu_custom_call.1} parent=1 // pred_region
      _
    $region5: #{tpu_custom_call.1} parent=1 // pred_fallthru
      _
    // Predicated region
    $region6: #{tpu_custom_call.1} parent=1 // pred_check
      _
    $region7: #{tpu_custom_call.1} parent=1 // pred_check_branch
      %17 = sbr.rel (0) target = $region9
    $region8: #{tpu_custom_call.1} parent=1 // pred_region
      _
    $region9: #{tpu_custom_call.1} parent=1 // pred_fallthru
      _
    // Predicated region
    $region10: #{tpu_custom_call.1} parent=1 // pred_check
      _
    $region11: #{tpu_custom_call.1} parent=1 // pred_check_branch
      %19 = sbr.rel (0) target = $region13
    $region12: #{tpu_custom_call.1} parent=1 // pred_region
      _
    $region13: #{tpu_custom_call.1} parent=1 // pred_fallthru
      _
    // Predicated region
    $region14: #{tpu_custom_call.1} parent=1 // pred_check
      _
    $region15: #{tpu_custom_call.1} parent=1 // pred_check_branch
      %21 = sbr.rel (0) target = $region17
    $region16: #{tpu_custom_call.1} parent=1 // pred_region
      %s23 = ssub.s32 512, 512
      %24 = vsyncadd [#allocation3], %s23
      %s25 = sshll.u32 [#allocation2], 4
      %s26 = int_to_ptr.vmem [resolvable:$true] %s25
      %31 = dma.hbm_to_vmem [thread:$0]  %s3, 512, %s26, [#allocation3], 128, 128, 8
    $region17: #{tpu_custom_call.1} parent=1 // pred_fallthru
      _
    // Predicated region
    $region18: #{tpu_custom_call.1} parent=1 // pred_check
      _
    $region19: #{tpu_custom_call.1} parent=1 // pred_check_branch
      %33 = sbr.rel (0) target = $region21
    $region20: #{tpu_custom_call.1} parent=1 // pred_region
      _
    $region21: #{tpu_custom_call.1} parent=1 // pred_fallthru
      _
    // Predicated region
    $region22: #{tpu_custom_call.1} parent=1 // pred_check
      _
    $region23: #{tpu_custom_call.1} parent=1 // pred_check_branch
      %35 = sbr.rel (0) target = $region25
    $region24: #{tpu_custom_call.1} parent=1 // pred_region
      _
    $region25: #{tpu_custom_call.1} parent=1 // pred_fallthru
      _
    // Predicated region
    $region26: #{tpu_custom_call.1} parent=1 // pred_check
      _
    $region27: #{tpu_custom_call.1} parent=1 // pred_check_branch
      %37 = sbr.rel (0) target = $region29
    $region28: #{tpu_custom_call.1} parent=1 // pred_region
      _
    $region29: #{tpu_custom_call.1} parent=1 // pred_fallthru
      _
    // Predicated region
    $region30: #{tpu_custom_call.1} parent=1 // pred_check
      _
    $region31: #{tpu_custom_call.1} parent=1 // pred_check_branch
      %39 = sbr.rel (0) target = $region33
    $region32: #{tpu_custom_call.1} parent=1 // pred_region
      %40 = dma.done [#allocation3], 512
    $region33: #{tpu_custom_call.1} parent=1 // pred_fallthru
      _
    %v41 = vld [vmem:[%s0] sm:$0xff]
    %v42 = vld [vmem:[%s1] sm:$0xff]
    %v43 = vld [vmem:[%s1 + $0x8] sm:$0xff]
    %v44 = vld [vmem:[%s1 + $0x10] sm:$0xff]
    %v45 = vld [vmem:[%s1 + $0x18] sm:$0x3f]
    %v46 = vld [vmem:[%s2] sm:$0x1]
    %v48 = vlaneseq
    %v49 = vshrl.u32 %v48, 7
    %v50 = vsub.s32 0, %v49
    %v51 = vrot.slane %v46, %v50
    %vm53 = vcmask 244736
    %v55 = vsel %vm53, %v41, 0
    %vm57 = vcmask 1045504
    %v59 = vsel %vm57, %v45, 0
    %61 = vmatprep.subr.mxu0 0.0
    %62 = vmatpush1.msra.mxu0 %v42
    %63 = vmatprep.subr.mxu0 0.0
    %64 = vmatpush1.msra.mxu0 %v43
    %65 = vmatprep.subr.mxu0 0.0
    %66 = vmatpush1.msra.mxu0 %v44
    %67 = vmatprep.subr.mxu0 0.0
    %68 = vmatpush1.msra.mxu0 %v59
    %69 = vmatprep.subr.mxu0 0.0
    %70 = vmatpush1.msra.mxu0 0.0
    %71 = vmatprep.subr.mxu0 0.0
    %72 = vmatpush1.msra.mxu0 0.0
    %73 = vmatprep.subr.mxu0 0.0
    %74 = vmatpush1.msra.mxu0 0.0
    %75 = vmatprep.subr.mxu0 0.0
    %76 = vmatpush1.msra.mxu0 0.0
    %77 = vmatprep.subr.mxu0 0.0
    %78 = vmatpush1.msra.mxu0 0.0
    %79 = vmatprep.subr.mxu0 0.0
    %80 = vmatpush1.msra.mxu0 0.0
    %81 = vmatprep.subr.mxu0 0.0
    %82 = vmatpush1.msra.mxu0 0.0
    %83 = vmatprep.subr.mxu0 0.0
    %84 = vmatpush1.msra.mxu0 0.0
    %85 = vmatprep.subr.mxu0 0.0
    %86 = vmatpush1.msra.mxu0 0.0
    %87 = vmatprep.subr.mxu0 0.0
    %88 = vmatpush1.msra.mxu0 0.0
    %89 = vmatprep.subr.mxu0 0.0
    %90 = vmatpush1.msra.mxu0 0.0
    %91 = vmatprep.subr.mxu0 0.0
    %92 = vmatpush1.msra.mxu0 0.0
    %93 = vmatprep.subr.mxu0 0.0
    %94 = vmatpush1.msra.mxu0 0.0
    %95 = vmatprep.subr.mxu0 0.0
    %96 = vmatpush1.msra.mxu0 0.0
    %97 = vmatprep.subr.mxu0 0.0
    %98 = vmatpush1.msra.mxu0 0.0
    %99 = vmatprep.subr.mxu0 0.0
    %100 = vmatpush1.msra.mxu0 0.0
    %101 = vmatprep.subr.mxu0 0.0
    %102 = vmatpush1.msra.mxu0 0.0
    %103 = vmatprep.subr.mxu0 0.0
    %104 = vmatpush1.msra.mxu0 0.0
    %105 = vmatprep.subr.mxu0 0.0
    %106 = vmatpush1.msra.mxu0 0.0
    %107 = vmatprep.subr.mxu0 0.0
    %108 = vmatpush1.msra.mxu0 0.0
    %109 = vmatprep.subr.mxu0 0.0
    %110 = vmatpush1.msra.mxu0 0.0
    %111 = vmatprep.subr.mxu0 0.0
    %112 = vmatpush1.msra.mxu0 0.0
    %113 = vmatprep.subr.mxu0 0.0
    %114 = vmatpush1.msra.mxu0 0.0
    %115 = vmatprep.subr.mxu0 0.0
    %116 = vmatpush1.msra.mxu0 0.0
    %117 = vmatprep.subr.mxu0 0.0
    %118 = vmatpush1.msra.mxu0 0.0
    %119 = vmatprep.subr.mxu0 0.0
    %120 = vmatpush1.msra.mxu0 0.0
    %121 = vmatprep.subr.mxu0 0.0
    %122 = vmatpush1.msra.mxu0 0.0
    %123 = vmatprep.subr.mxu0 0.0
    %124 = vmatpush1.msra.mxu0 0.0
    %125 = vmatprep.mubr.f32.mxu0 0.0
    %126 = vmatmul.mubr.f32.gmra.mrb[0].mxu0 %v55
    %v127 = vpop.f32.mrb[0].mxu0
    %v128 = vadd.f32 %v51, %v127
    %v129 = vpop.f32.mrb[0].mxu0
    %130 = vdwg.mxu0
    %v131 = vmax.f32 %v128, 0.0
    %v132 = vld [vmem:[#allocation2] sm:$0xff]
    %v133 = vld [vmem:[#allocation2 + $0x8] sm:$0xff]
    %v134 = vld [vmem:[#allocation2 + $0x10] sm:$0xff]
    %v135 = vld [vmem:[#allocation2 + $0x18] sm:$0xff]
    %v136 = vld [vmem:[%s4] sm:$0x1]
    %v138 = vlaneseq
    %v139 = vshrl.u32 %v138, 7
    %v140 = vsub.s32 0, %v139
    %v141 = vrot.slane %v136, %v140
    %vm143 = vcmask 261120
    %v145 = vsel %vm143, %v131, 0
    %147 = vmatprep.subr.mxu0 0.0
    %148 = vmatpush1.msra.mxu0 %v132
    %149 = vmatprep.subr.mxu0 0.0
    %150 = vmatpush1.msra.mxu0 %v133
    %151 = vmatprep.subr.mxu0 0.0
    %152 = vmatpush1.msra.mxu0 %v134
    %153 = vmatprep.subr.mxu0 0.0
    %154 = vmatpush1.msra.mxu0 %v135
    %155 = vmatprep.subr.mxu0 0.0
    %156 = vmatpush1.msra.mxu0 0.0
    %157 = vmatprep.subr.mxu0 0.0
    %158 = vmatpush1.msra.mxu0 0.0
    %159 = vmatprep.subr.mxu0 0.0
    %160 = vmatpush1.msra.mxu0 0.0
    %161 = vmatprep.subr.mxu0 0.0
    %162 = vmatpush1.msra.mxu0 0.0
    %163 = vmatprep.subr.mxu0 0.0
    %164 = vmatpush1.msra.mxu0 0.0
    %165 = vmatprep.subr.mxu0 0.0
    %166 = vmatpush1.msra.mxu0 0.0
    %167 = vmatprep.subr.mxu0 0.0
    %168 = vmatpush1.msra.mxu0 0.0
    %169 = vmatprep.subr.mxu0 0.0
    %170 = vmatpush1.msra.mxu0 0.0
    %171 = vmatprep.subr.mxu0 0.0
    %172 = vmatpush1.msra.mxu0 0.0
    %173 = vmatprep.subr.mxu0 0.0
    %174 = vmatpush1.msra.mxu0 0.0
    %175 = vmatprep.subr.mxu0 0.0
    %176 = vmatpush1.msra.mxu0 0.0
    %177 = vmatprep.subr.mxu0 0.0
    %178 = vmatpush1.msra.mxu0 0.0
    %179 = vmatprep.subr.mxu0 0.0
    %180 = vmatpush1.msra.mxu0 0.0
    %181 = vmatprep.subr.mxu0 0.0
    %182 = vmatpush1.msra.mxu0 0.0
    %183 = vmatprep.subr.mxu0 0.0
    %184 = vmatpush1.msra.mxu0 0.0
    %185 = vmatprep.subr.mxu0 0.0
    %186 = vmatpush1.msra.mxu0 0.0
    %187 = vmatprep.subr.mxu0 0.0
    %188 = vmatpush1.msra.mxu0 0.0
    %189 = vmatprep.subr.mxu0 0.0
    %190 = vmatpush1.msra.mxu0 0.0
    %191 = vmatprep.subr.mxu0 0.0
    %192 = vmatpush1.msra.mxu0 0.0
    %193 = vmatprep.subr.mxu0 0.0
    %194 = vmatpush1.msra.mxu0 0.0
    %195 = vmatprep.subr.mxu0 0.0
    %196 = vmatpush1.msra.mxu0 0.0
    %197 = vmatprep.subr.mxu0 0.0
    %198 = vmatpush1.msra.mxu0 0.0
    %199 = vmatprep.subr.mxu0 0.0
    %200 = vmatpush1.msra.mxu0 0.0
    %201 = vmatprep.subr.mxu0 0.0
    %202 = vmatpush1.msra.mxu0 0.0
    %203 = vmatprep.subr.mxu0 0.0
    %204 = vmatpush1.msra.mxu0 0.0
    %205 = vmatprep.subr.mxu0 0.0
    %206 = vmatpush1.msra.mxu0 0.0
    %207 = vmatprep.subr.mxu0 0.0
    %208 = vmatpush1.msra.mxu0 0.0
    %209 = vmatprep.subr.mxu0 0.0
    %210 = vmatpush1.msra.mxu0 0.0
    %211 = vmatprep.mubr.f32.mxu0 0.0
    %212 = vmatmul.mubr.f32.gmra.mrb[0].mxu0 %v145
    %v213 = vpop.f32.mrb[0].mxu0
    %v214 = vadd.f32 %v141, %v213
    %v215 = vpop.f32.mrb[0].mxu0
    %216 = vdwg.mxu0
    %v217 = vmax.f32 %v214, 0.0
    %v218 = vld [vmem:[%s5] sm:$0xff]
    %v219 = vld [vmem:[%s5 + $0x8] sm:$0xff]
    %v220 = vld [vmem:[%s5 + $0x10] sm:$0xff]
    %v221 = vld [vmem:[%s5 + $0x18] sm:$0xff]
    %v222 = vld [vmem:[%s6] sm:$0x1]
    %v224 = vlaneseq
    %v225 = vshrl.u32 %v224, 7
    %v226 = vsub.s32 0, %v225
    %v227 = vrot.slane %v222, %v226
    %v230 = vsel %vm143, %v217, 0
    %232 = vmatprep.subr.mxu0 0.0
    %233 = vmatpush1.msra.mxu0 %v218
    %234 = vmatprep.subr.mxu0 0.0
    %235 = vmatpush1.msra.mxu0 %v219
    %236 = vmatprep.subr.mxu0 0.0
    %237 = vmatpush1.msra.mxu0 %v220
    %238 = vmatprep.subr.mxu0 0.0
    %239 = vmatpush1.msra.mxu0 %v221
    %240 = vmatprep.subr.mxu0 0.0
    %241 = vmatpush1.msra.mxu0 0.0
    %242 = vmatprep.subr.mxu0 0.0
    %243 = vmatpush1.msra.mxu0 0.0
    %244 = vmatprep.subr.mxu0 0.0
    %245 = vmatpush1.msra.mxu0 0.0
    %246 = vmatprep.subr.mxu0 0.0
    %247 = vmatpush1.msra.mxu0 0.0
    %248 = vmatprep.subr.mxu0 0.0
    %249 = vmatpush1.msra.mxu0 0.0
    %250 = vmatprep.subr.mxu0 0.0
    %251 = vmatpush1.msra.mxu0 0.0
    %252 = vmatprep.subr.mxu0 0.0
    %253 = vmatpush1.msra.mxu0 0.0
    %254 = vmatprep.subr.mxu0 0.0
    %255 = vmatpush1.msra.mxu0 0.0
    %256 = vmatprep.subr.mxu0 0.0
    %257 = vmatpush1.msra.mxu0 0.0
    %258 = vmatprep.subr.mxu0 0.0
    %259 = vmatpush1.msra.mxu0 0.0
    %260 = vmatprep.subr.mxu0 0.0
    %261 = vmatpush1.msra.mxu0 0.0
    %262 = vmatprep.subr.mxu0 0.0
    %263 = vmatpush1.msra.mxu0 0.0
    %264 = vmatprep.subr.mxu0 0.0
    %265 = vmatpush1.msra.mxu0 0.0
    %266 = vmatprep.subr.mxu0 0.0
    %267 = vmatpush1.msra.mxu0 0.0
    %268 = vmatprep.subr.mxu0 0.0
    %269 = vmatpush1.msra.mxu0 0.0
    %270 = vmatprep.subr.mxu0 0.0
    %271 = vmatpush1.msra.mxu0 0.0
    %272 = vmatprep.subr.mxu0 0.0
    %273 = vmatpush1.msra.mxu0 0.0
    %274 = vmatprep.subr.mxu0 0.0
    %275 = vmatpush1.msra.mxu0 0.0
    %276 = vmatprep.subr.mxu0 0.0
    %277 = vmatpush1.msra.mxu0 0.0
    %278 = vmatprep.subr.mxu0 0.0
    %279 = vmatpush1.msra.mxu0 0.0
    %280 = vmatprep.subr.mxu0 0.0
    %281 = vmatpush1.msra.mxu0 0.0
    %282 = vmatprep.subr.mxu0 0.0
    %283 = vmatpush1.msra.mxu0 0.0
    %284 = vmatprep.subr.mxu0 0.0
    %285 = vmatpush1.msra.mxu0 0.0
    %286 = vmatprep.subr.mxu0 0.0
    %287 = vmatpush1.msra.mxu0 0.0
    %288 = vmatprep.subr.mxu0 0.0
    %289 = vmatpush1.msra.mxu0 0.0
    %290 = vmatprep.subr.mxu0 0.0
    %291 = vmatpush1.msra.mxu0 0.0
    %292 = vmatprep.subr.mxu0 0.0
    %293 = vmatpush1.msra.mxu0 0.0
    %294 = vmatprep.subr.mxu0 0.0
    %295 = vmatpush1.msra.mxu0 0.0
    %296 = vmatprep.mubr.f32.mxu0 0.0
    %297 = vmatmul.mubr.f32.gmra.mrb[0].mxu0 %v230
    %v298 = vpop.f32.mrb[0].mxu0
    %v299 = vadd.f32 %v227, %v298
    %v300 = vpop.f32.mrb[0].mxu0
    %301 = vdwg.mxu0
    %v302 = vand.u32 2147483647, %v299
    %v303 = vtanh.pop %v299
    %v304 = vadd.f32 %v303, 1.0
    %v305 = vmul.f32 %v304, 97.5
    %v306 = vadd.f32 %v305, 5.0
    %v307 = vlaneseq
    %v308 = vand.u32 %v307, 127
    %v309 = vand.u32 %v308, 1
    %vm310 = vcmp.eq.s32.totalorder %v309, 0
    %v311 = vsel %vm310, %v302, %v306
    %vm312 = vcmask 130048
    %313 = vst.msk [vmem:[#allocation5] sm:$0xff] %vm312, %v311
    // Predicated region
    $region34: #{tpu_custom_call.1} parent=1 // pred_check
      _
    $region35: #{tpu_custom_call.1} parent=1 // pred_check_branch
      %315 = sbr.rel (0) target = $region37
    $region36: #{tpu_custom_call.1} parent=1 // pred_region
      %s317 = ssub.s32 128, 128
      %318 = vsyncadd [#allocation4], %s317
      %s320 = sshll.u32 [#allocation5], 4
      %s321 = int_to_ptr.vmem [resolvable:$true] %s320
      %323 = dma.vmem_to_hbm [thread:$0]  %s321, 128, %s7, [#allocation4]
    $region37: #{tpu_custom_call.1} parent=1 // pred_fallthru
      _
    // Predicated region
    $region38: #{tpu_custom_call.1} parent=1 // pred_check
      _
    $region39: #{tpu_custom_call.1} parent=1 // pred_check_branch
      %325 = sbr.rel (0) target = $region41
    $region40: #{tpu_custom_call.1} parent=1 // pred_region
      %326 = dma.done [#allocation4], 128
    $region41: #{tpu_custom_call.1} parent=1 // pred_fallthru
      _
    %327 = vsyncpa [#allocation3], 1
    %328 = vsyncpa [#allocation4], 1

</llo_original>
